<compile_context>
chip_gen: v6e
topology: v6e:2x2x1
jax: 0.10.0
libtpu: 0.0.40
codegen_flags: <defaults>
</compile_context>

<pallas_src>
import math
import jax
import jax.numpy as jnp
from jax.experimental import pallas as pl
from jax.experimental.pallas import tpu as pltpu


LANE = 128  # lane (last-dim) alignment; output/hidden dims are padded to this


def _round_up(n: int, m: int) -> int:
    return ((n + m - 1) // m) * m


def _make_fused_kernel(n_layers: int):
    """Kernel: refs = (x, w0, b0, w1, b1, ..., out).
    All layers run in one body; the activation never leaves VMEM/vregs."""
    def kernel(*refs):
        x_ref = refs[0]
        o_ref = refs[-1]
        h = x_ref[...].astype(jnp.float32)
        for l in range(n_layers):
            w_ref = refs[1 + 2 * l]   # bf16 (in_dim, out_pad), already W^T
            b_ref = refs[2 + 2 * l]   # f32  (1, out_pad)
            # bf16 x bf16 MXU matmul with explicit f32 accumulation; bias add in f32.
            h = jnp.dot(h.astype(jnp.bfloat16), w_ref[...],
                        preferred_element_type=jnp.float32) + b_ref[...]
        o_ref[...] = h.astype(o_ref.dtype)
    return kernel


def init_lin_qnet_params(layer_sizes, key):
    """PyTorch-style init: U(-1/sqrt(fan_in), 1/sqrt(fan_in)).
    Returns raw f32 params in PyTorch layout: [(W (out,in), b (out,)), ...]."""
    params = []
    for i, o in zip(layer_sizes[:-1], layer_sizes[1:]):
        key, kw, kb = jax.random.split(key, 3)
        bound = 1.0 / math.sqrt(i)
        w = jax.random.uniform(kw, (o, i), jnp.float32, -bound, bound)
        b = jax.random.uniform(kb, (o,), jnp.float32, -bound, bound)
        params.append((w, b))
    return params


def prepare_params(raw_params):
    """One-time prep (NOT per forward):
      * transpose W (out,in) -> (in,out),
      * cast W to bf16,
      * pad the OUTPUT (lane) dim of every layer to a multiple of 128,
      * pad the contraction dim only for layers > 0 (to the previous layer's
        padded output width); layer 0 keeps the raw input width so x needs no
        wrapper-side padding,
      * keep bias in f32 as (1, out_pad).
    Zero-padded rows/cols stay inert through the pure-Linear stack."""
    prepared = []
    for l, (w, b) in enumerate(raw_params):
        o, i = w.shape
        o_pad = _round_up(o, LANE)
        i_dim = i if l == 0 else _round_up(i, LANE)
        w_t = jnp.zeros((i_dim, o_pad), jnp.bfloat16).at[:i, :o].set(
            w.T.astype(jnp.bfloat16))
        b_p = jnp.zeros((1, o_pad), jnp.float32).at[0, :o].set(b)
        prepared.append((w_t, b_p))
    return prepared


def _vmem_budget_bytes(prepared_params, bm, in_dim, out_pad):
    """Explicit VMEM budget: params + double-buffered IO blocks + intermediates.
    Floor at the 32 MiB scoped default, cap at v7x's 64 MiB physical VMEM."""
    param_b = sum(int(w.size) * w.dtype.itemsize + int(b.size) * b.dtype.itemsize
                  for w, b in prepared_params)
    widest = max(int(w.shape[1]) for w, _ in prepared_params)
    io_b = 2 * (bm * in_dim * 4 + bm * out_pad * 4)
    act_b = bm * widest * (4 + 2)          # f32 activation + bf16 cast copy
    need = param_b + io_b + act_b
    return min(64 << 20, max(32 << 20, int(need * 1.5)))


def lin_qnet_forward(x, prepared_params, *, block_bm=256):
    """Forward of Lin_Qnet fused into one pallas_call.

    Returns the lane-padded (B, out_pad) f32 slab; slice [:, :out_features]
    only at the final consumer (keeps the forward free of pad/slice XLA ops)."""
    B, I = x.shape
    assert I == prepared_params[0][0].shape[0], "x feature dim mismatch"
    out_pad = prepared_params[-1][0].shape[1]
    n_layers = len(prepared_params)

    flat_inputs = [x]
    for w_t, b_p in prepared_params:
        flat_inputs.extend([w_t, b_p])

    use_grid = (B >= 2 * block_bm) and (B % block_bm == 0)
    bm = block_bm if use_grid else B
    vmem_limit = _vmem_budget_bytes(prepared_params, bm, I, out_pad)

    if use_grid:
        # Grid over the batch; independent blocks -> "parallel" so the work is
        # sharded across TensorCores on v7x (harmless on v5e/v6e).
        grid = (B // block_bm,)
        in_specs = [pl.BlockSpec((block_bm, I), lambda i: (i, 0))]
        for w_t, b_p in prepared_params:
            # Same block every grid step -> weights stay resident, no re-DMA.
            in_specs.append(pl.BlockSpec(w_t.shape, lambda i: (0, 0)))
            in_specs.append(pl.BlockSpec(b_p.shape, lambda i: (0, 0)))
        out_specs = pl.BlockSpec((block_bm, out_pad), lambda i: (i, 0))
        compiler_params = pltpu.CompilerParams(
            dimension_semantics=("parallel",),
            vmem_limit_bytes=vmem_limit)
        grid_kwargs = dict(grid=grid)
    else:
        # Tiny batch: gridless, everything mapped whole into VMEM, no
        # pointless double-buffering.
        vmem_spec = pl.BlockSpec(memory_space=pltpu.MemorySpace.VMEM)
        in_specs = [vmem_spec] * len(flat_inputs)
        out_specs = vmem_spec
        compiler_params = pltpu.CompilerParams(vmem_limit_bytes=vmem_limit)
        grid_kwargs = {}

    return pl.pallas_call(
        _make_fused_kernel(n_layers),
        out_shape=jax.ShapeDtypeStruct((B, out_pad), jnp.float32),
        in_specs=in_specs,
        out_specs=out_specs,
        compiler_params=compiler_params,
        **grid_kwargs,
    )(*flat_inputs)


def lin_qnet_forward_ref(x, raw_params):
    h = x
    for w, b in raw_params:
        h = h @ w.T + b
    return h


if __name__ == "__main__":
    # Shapes implied by the module: layer_sizes = (in, hidden, out), x = (batch, in)
    layer_sizes = (16, 32, 8)
    out_features = layer_sizes[-1]
    out_pad = _round_up(out_features, LANE)

    key = jax.random.PRNGKey(0)
    key, kx_small, kx_big = jax.random.split(key, 3)
    raw_params = init_lin_qnet_params(layer_sizes, key)
    prepared = prepare_params(raw_params)   # one-time transpose + bf16 cast + pad

    # --- Small batch (gridless, fully VMEM-resident path) ---
    x_small = jax.random.normal(kx_small, (2, layer_sizes[0]), jnp.float32)
    out_small = jax.block_until_ready(lin_qnet_forward(x_small, prepared))
    assert out_small.shape == (2, out_pad)
    ref_small = lin_qnet_forward_ref(x_small, raw_params)
    # bf16 weights/activations -> loosened tolerance (f32 accumulation kept).
    assert jnp.allclose(out_small[:, :out_features], ref_small, atol=5e-2, rtol=5e-2)

    # --- Realistic batch (gridded path; "parallel" batch axis for v7x 2-TC) ---
    x_big = jax.random.normal(kx_big, (512, layer_sizes[0]), jnp.float32)
    out_big = jax.block_until_ready(lin_qnet_forward(x_big, prepared))
    assert out_big.shape == (512, out_pad)
    ref_big = lin_qnet_forward_ref(x_big, raw_params)
    assert jnp.allclose(out_big[:, :out_features], ref_big, atol=5e-2, rtol=5e-2)

    # TODO(synk): save()/load() (torch.save / pickle file I/O) have no Pallas
    # equivalent and are intentionally not implemented.
    print("KERNEL_OK")
</pallas_src>

<mosaic_0001>
module attributes {stable_mosaic.version = 11 : i64} {
  func.func @kernel(%arg0: memref<2x16xf32, #tpu.memory_space<vmem>>, %arg1: memref<16x128xbf16, #tpu.memory_space<vmem>>, %arg2: memref<1x128xf32, #tpu.memory_space<vmem>>, %arg3: memref<128x128xbf16, #tpu.memory_space<vmem>>, %arg4: memref<1x128xf32, #tpu.memory_space<vmem>>, %arg5: memref<2x128xf32, #tpu.memory_space<vmem>>) attributes {dimension_semantics = [], scalar_prefetch = 0 : i64, scratch_operands = 0 : i64, tpu.core_type = #tpu.core_type<tc>} {
    %c0 = arith.constant 0 : index
    %c0_0 = arith.constant 0 : index
    %0 = vector.load %arg0[%c0, %c0_0] : memref<2x16xf32, #tpu.memory_space<vmem>>, vector<2x16xf32>
    %1 = arith.truncf %0 : vector<2x16xf32> to vector<2x16xbf16>
    %c0_1 = arith.constant 0 : index
    %c0_2 = arith.constant 0 : index
    %2 = vector.load %arg1[%c0_1, %c0_2] : memref<16x128xbf16, #tpu.memory_space<vmem>>, vector<16x128xbf16>
    %cst = arith.constant dense<0.000000e+00> : vector<2x128xf32>
    %3 = tpu.matmul %1, %2, %cst {dimension_numbers = #tpu.dot_dimension_numbers<[1], [0], [0], [1], [0, 0, 1, 1], [], []>} : vector<2x16xbf16>, vector<16x128xbf16>, vector<2x128xf32> -> vector<2x128xf32>
    %c0_3 = arith.constant 0 : index
    %c0_4 = arith.constant 0 : index
    %4 = vector.load %arg2[%c0_3, %c0_4] : memref<1x128xf32, #tpu.memory_space<vmem>>, vector<1x128xf32>
    %5 = vector.broadcast %4 : vector<1x128xf32> to vector<2x128xf32>
    %6 = arith.addf %3, %5 : vector<2x128xf32>
    %7 = arith.truncf %6 : vector<2x128xf32> to vector<2x128xbf16>
    %c0_5 = arith.constant 0 : index
    %c0_6 = arith.constant 0 : index
    %8 = vector.load %arg3[%c0_5, %c0_6] : memref<128x128xbf16, #tpu.memory_space<vmem>>, vector<128x128xbf16>
    %cst_7 = arith.constant dense<0.000000e+00> : vector<2x128xf32>
    %9 = tpu.matmul %7, %8, %cst_7 {dimension_numbers = #tpu.dot_dimension_numbers<[1], [0], [0], [1], [0, 0, 1, 1], [], []>} : vector<2x128xbf16>, vector<128x128xbf16>, vector<2x128xf32> -> vector<2x128xf32>
    %c0_8 = arith.constant 0 : index
    %c0_9 = arith.constant 0 : index
    %10 = vector.load %arg4[%c0_8, %c0_9] : memref<1x128xf32, #tpu.memory_space<vmem>>, vector<1x128xf32>
    %11 = vector.broadcast %10 : vector<1x128xf32> to vector<2x128xf32>
    %12 = arith.addf %9, %11 : vector<2x128xf32>
    %c0_10 = arith.constant 0 : index
    %c0_11 = arith.constant 0 : index
    %13 = vector.load %arg5[%c0_10, %c0_11] : memref<2x128xf32, #tpu.memory_space<vmem>>, vector<2x128xf32>
    tpu.vector_store %arg5[%c0_10, %c0_11], %12 {strides = array<i32>} : memref<2x128xf32, #tpu.memory_space<vmem>>, vector<2x128xf32>,
    return
  }
}

</mosaic_0001>

<llo_original>
// kernel: tpu_custom_call.1
$region0: #{tpu_custom_call.1}
  #allocation0 [shape = 'u32[]', space=smem, size = 0x4, offset = 0x4, fixed_abs, tag = 'smem constant byte address 0x4 - core index']
  #allocation1 [shape = 'u32[144,128]{1,0:T(1,128)}', space=vmem, size = 0x12000, scoped, tag = 'internal scratch']
  %s0 = inlined_call_operand.hbm [shape: f32[2,16], index: 0, kind: input, shape index: {}]
  %s1 = inlined_call_operand.hbm [shape: bf16[16,128], index: 1, kind: input, shape index: {}]
  %s2 = inlined_call_operand.vmem [shape: f32[1,128], index: 2, kind: input, shape index: {}]
  %s3 = inlined_call_operand.hbm [shape: bf16[128,128], index: 3, kind: input, shape index: {}]
  %s4 = inlined_call_operand.vmem [shape: f32[1,128], index: 4, kind: input, shape index: {}]
  %s5 = inlined_call_operand.hbm [shape: f32[2,128], index: 5, kind: output, shape index: {}]
  %s6 = sld [smem:[#allocation0]]
  $region42: #{tpu_custom_call.1} parent=0
    _
  %s8 = ssub.s32 1, %s6
  %s9 = scalar_select 0, %s8, %s6
  $region1: #{tpu_custom_call.1} parent=0
    #allocation2 [shape = 'u8[1024]{0}', space=vmem, size = 0x400, scoped, tag = 'input window, operand 0, single buffered']
    #allocation3 [shape = 's32[1]{0}', space=sflag, size = 0x4, scoped, tag = 'scoped memory for tpu_custom_call.1']
    #allocation4 [shape = 's32[1]{0}', space=sflag, size = 0x4, scoped, tag = 'scoped memory for tpu_custom_call.1']
    #allocation5 [shape = 'u8[4096]{0}', space=vmem, size = 0x1000, scoped, tag = 'input window, operand 1, single buffered']
    #allocation6 [shape = 's32[1]{0}', space=sflag, size = 0x4, scoped, tag = 'scoped memory for tpu_custom_call.1']
    #allocation7 [shape = 'u8[32768]{0}', space=vmem, size = 0x8000, scoped, tag = 'input window, operand 3, single buffered']
    #allocation8 [shape = 'u8[1024]{0}', space=vmem, size = 0x400, scoped, tag = 'output window, operand 0, single buffered']
    %10 = vsyncpa [#allocation3], 0
    %11 = vsyncpa [#allocation6], 0
    %12 = vsyncpa [#allocation4], 0
    // Predicated region
    $region2: #{tpu_custom_call.1} parent=1 // pred_check
      _
    $region3: #{tpu_custom_call.1} parent=1 // pred_check_branch
      %14 = sbr.rel (0) target = $region5
    $region4: #{tpu_custom_call.1} parent=1 // pred_region
      %s16 = ssub.s32 32, 32
      %17 = vsyncadd [#allocation3], %s16
      %s19 = sshll.u32 [#allocation2], 4
      %s20 = int_to_ptr.vmem [resolvable:$true] %s19
      %22 = dma.hbm_to_vmem [thread:$0]  %s0, 32, %s20, [#allocation3]
    $region5: #{tpu_custom_call.1} parent=1 // pred_fallthru
      _
    // Predicated region
    $region6: #{tpu_custom_call.1} parent=1 // pred_check
      _
    $region7: #{tpu_custom_call.1} parent=1 // pred_check_branch
      %24 = sbr.rel (0) target = $region9
    $region8: #{tpu_custom_call.1} parent=1 // pred_region
      %s26 = ssub.s32 128, 128
      %27 = vsyncadd [#allocation6], %s26
      %s28 = sshll.u32 [#allocation5], 4
      %s29 = int_to_ptr.vmem [resolvable:$true] %s28
      %34 = dma.hbm_to_vmem [thread:$0]  %s1, 128, %s29, [#allocation6], 64, 64, 4
    $region9: #{tpu_custom_call.1} parent=1 // pred_fallthru
      _
    // Predicated region
    $region10: #{tpu_custom_call.1} parent=1 // pred_check
      _
    $region11: #{tpu_custom_call.1} parent=1 // pred_check_branch
      %36 = sbr.rel (0) target = $region13
    $region12: #{tpu_custom_call.1} parent=1 // pred_region
      _
    $region13: #{tpu_custom_call.1} parent=1 // pred_fallthru
      _
    // Predicated region
    $region14: #{tpu_custom_call.1} parent=1 // pred_check
      _
    $region15: #{tpu_custom_call.1} parent=1 // pred_check_branch
      %38 = sbr.rel (0) target = $region17
    $region16: #{tpu_custom_call.1} parent=1 // pred_region
      %s40 = ssub.s32 1024, 1024
      %41 = vsyncadd [#allocation6], %s40
      %s42 = sshll.u32 [#allocation7], 4
      %s43 = int_to_ptr.vmem [resolvable:$true] %s42
      %48 = dma.hbm_to_vmem [thread:$0]  %s3, 1024, %s43, [#allocation6], 64, 64, 4
    $region17: #{tpu_custom_call.1} parent=1 // pred_fallthru
      _
    // Predicated region
    $region18: #{tpu_custom_call.1} parent=1 // pred_check
      _
    $region19: #{tpu_custom_call.1} parent=1 // pred_check_branch
      %50 = sbr.rel (0) target = $region21
    $region20: #{tpu_custom_call.1} parent=1 // pred_region
      _
    $region21: #{tpu_custom_call.1} parent=1 // pred_fallthru
      _
    // Predicated region
    $region22: #{tpu_custom_call.1} parent=1 // pred_check
      _
    $region23: #{tpu_custom_call.1} parent=1 // pred_check_branch
      %52 = sbr.rel (0) target = $region25
    $region24: #{tpu_custom_call.1} parent=1 // pred_region
      %53 = dma.done [#allocation3], 32
    $region25: #{tpu_custom_call.1} parent=1 // pred_fallthru
      _
    // Predicated region
    $region26: #{tpu_custom_call.1} parent=1 // pred_check
      _
    $region27: #{tpu_custom_call.1} parent=1 // pred_check_branch
      %55 = sbr.rel (0) target = $region29
    $region28: #{tpu_custom_call.1} parent=1 // pred_region
      %56 = dma.done [#allocation6], 128
    $region29: #{tpu_custom_call.1} parent=1 // pred_fallthru
      _
    // Predicated region
    $region30: #{tpu_custom_call.1} parent=1 // pred_check
      _
    $region31: #{tpu_custom_call.1} parent=1 // pred_check_branch
      %58 = sbr.rel (0) target = $region33
    $region32: #{tpu_custom_call.1} parent=1 // pred_region
      %59 = dma.done [#allocation6], 1024
    $region33: #{tpu_custom_call.1} parent=1 // pred_fallthru
      _
    %v61 = vld [vmem:[#allocation2] sm:$0x3]
    %v62 = vpack.c.bf16 %v61, %v61
    %v63 = vld [vmem:[#allocation5] sm:$0xf]
    %v64 = vld [vmem:[#allocation5 + $0x4] sm:$0xf]
    %v65 = vld [vmem:[%s2] sm:$0x1]
    %v67 = vlaneseq
    %v68 = vshrl.u32 %v67, 7
    %v69 = vsub.s32 0, %v68
    %v70 = vrot.slane %v65, %v69
    %v74 = vunpack.c.l.b16 %v63
    %v75 = vunpack.c.l.b16 %v64
    %v76 = vpack.c.b16 %v75, %v74
    %vm78 = vcmask 130048
    %v80 = vsel %vm78, %v62, 0
    %82 = vmatprep.subr.bf16.mxu0 0
    %83 = vmatpush1.bf16.msra.mxu0 0
    %84 = vmatprep.subr.bf16.mxu0 0
    %85 = vmatpush1.bf16.msra.mxu0 0
    %86 = vmatprep.subr.bf16.mxu0 0
    %87 = vmatpush1.bf16.msra.mxu0 0
    %88 = vmatprep.subr.bf16.mxu0 0
    %89 = vmatpush1.bf16.msra.mxu0 0
    %90 = vmatprep.subr.bf16.mxu0 0
    %91 = vmatpush1.bf16.msra.mxu0 0
    %92 = vmatprep.subr.bf16.mxu0 0
    %93 = vmatpush1.bf16.msra.mxu0 0
    %94 = vmatprep.subr.bf16.mxu0 0
    %95 = vmatpush1.bf16.msra.mxu0 0
    %96 = vmatprep.subr.bf16.mxu0 0
    %97 = vmatpush1.bf16.msra.mxu0 %v76
    %98 = vmatprep.subr.bf16.mxu0 0
    %99 = vmatpush2.bf16.msra.mxu0 0
    %100 = vmatprep.subr.bf16.mxu0 0
    %101 = vmatpush2.bf16.msra.mxu0 0
    %102 = vmatprep.subr.bf16.mxu0 0
    %103 = vmatpush2.bf16.msra.mxu0 0
    %104 = vmatprep.subr.bf16.mxu0 0
    %105 = vmatpush2.bf16.msra.mxu0 0
    %106 = vmatprep.subr.bf16.mxu0 0
    %107 = vmatpush2.bf16.msra.mxu0 0
    %108 = vmatprep.subr.bf16.mxu0 0
    %109 = vmatpush2.bf16.msra.mxu0 0
    %110 = vmatprep.subr.bf16.mxu0 0
    %111 = vmatpush2.bf16.msra.mxu0 0
    %112 = vmatprep.subr.bf16.mxu0 0
    %113 = vmatpush2.bf16.msra.mxu0 0
    %114 = vmatprep.mubr.bf16.mxu0 0
    %115 = vmatmul.mubr.bf16.gmra.mxu0 %v80
    %v116 = vpop.f32.mrf.mxu0
    %v117 = vadd.f32 %v70, %v116
    %v118 = vpop.f32.mrf.mxu0
    %v119 = vpop.f32.mrf.mxu0
    %v120 = vpop.f32.mrf.mxu0
    %121 = vdwg.mxu0
    %v122 = vpack.c.bf16 %v117, %v117
    %v123 = vld [vmem:[#allocation7] sm:$0xf]
    %v124 = vld [vmem:[#allocation7 + $0x4] sm:$0xf]
    %v125 = vld [vmem:[#allocation7 + $0x8] sm:$0xf]
    %v126 = vld [vmem:[#allocation7 + $0xc] sm:$0xf]
    %v127 = vld [vmem:[#allocation7 + $0x10] sm:$0xf]
    %v128 = vld [vmem:[#allocation7 + $0x14] sm:$0xf]
    %v129 = vld [vmem:[#allocation7 + $0x18] sm:$0xf]
    %v130 = vld [vmem:[#allocation7 + $0x1c] sm:$0xf]
    %v131 = vld [vmem:[#allocation7 + $0x20] sm:$0xf]
    %v132 = vld [vmem:[#allocation7 + $0x24] sm:$0xf]
    %v133 = vld [vmem:[#allocation7 + $0x28] sm:$0xf]
    %v134 = vld [vmem:[#allocation7 + $0x2c] sm:$0xf]
    %v135 = vld [vmem:[#allocation7 + $0x30] sm:$0xf]
    %v136 = vld [vmem:[#allocation7 + $0x34] sm:$0xf]
    %v137 = vld [vmem:[#allocation7 + $0x38] sm:$0xf]
    %v138 = vld [vmem:[#allocation7 + $0x3c] sm:$0xf]
    %v139 = vld [vmem:[%s4] sm:$0x1]
    %v141 = vlaneseq
    %v142 = vshrl.u32 %v141, 7
    %v143 = vsub.s32 0, %v142
    %v144 = vrot.slane %v139, %v143
    %v162 = vunpack.c.l.b16 %v123
    %v163 = vunpack.c.l.b16 %v124
    %v164 = vunpack.c.l.b16 %v125
    %v165 = vunpack.c.l.b16 %v126
    %v166 = vunpack.c.l.b16 %v127
    %v167 = vunpack.c.l.b16 %v128
    %v168 = vunpack.c.l.b16 %v129
    %v169 = vunpack.c.l.b16 %v130
    %v170 = vunpack.c.l.b16 %v131
    %v171 = vunpack.c.l.b16 %v132
    %v172 = vunpack.c.l.b16 %v133
    %v173 = vunpack.c.l.b16 %v134
    %v174 = vunpack.c.l.b16 %v135
    %v175 = vunpack.c.l.b16 %v136
    %v176 = vunpack.c.l.b16 %v137
    %v177 = vunpack.c.l.b16 %v138
    %v178 = vpack.c.b16 %v163, %v162
    %v179 = vpack.c.b16 %v165, %v164
    %v180 = vpack.c.b16 %v167, %v166
    %v181 = vpack.c.b16 %v169, %v168
    %v182 = vpack.c.b16 %v171, %v170
    %v183 = vpack.c.b16 %v173, %v172
    %v184 = vpack.c.b16 %v175, %v174
    %v185 = vpack.c.b16 %v177, %v176
    %194 = vmatprep.subr.bf16.mxu0 0
    %195 = vmatpush1.bf16.msra.mxu0 %v185
    %196 = vmatprep.subr.bf16.mxu0 0
    %197 = vmatpush1.bf16.msra.mxu0 %v184
    %198 = vmatprep.subr.bf16.mxu0 0
    %199 = vmatpush1.bf16.msra.mxu0 %v183
    %200 = vmatprep.subr.bf16.mxu0 0
    %201 = vmatpush1.bf16.msra.mxu0 %v182
    %202 = vmatprep.subr.bf16.mxu0 0
    %203 = vmatpush1.bf16.msra.mxu0 %v181
    %204 = vmatprep.subr.bf16.mxu0 0
    %205 = vmatpush1.bf16.msra.mxu0 %v180
    %206 = vmatprep.subr.bf16.mxu0 0
    %207 = vmatpush1.bf16.msra.mxu0 %v179
    %208 = vmatprep.subr.bf16.mxu0 0
    %209 = vmatpush1.bf16.msra.mxu0 %v178
    %210 = vmatprep.subr.bf16.mxu0 0
    %211 = vmatpush2.bf16.msra.mxu0 0
    %212 = vmatprep.subr.bf16.mxu0 0
    %213 = vmatpush2.bf16.msra.mxu0 0
    %214 = vmatprep.subr.bf16.mxu0 0
    %215 = vmatpush2.bf16.msra.mxu0 0
    %216 = vmatprep.subr.bf16.mxu0 0
    %217 = vmatpush2.bf16.msra.mxu0 0
    %218 = vmatprep.subr.bf16.mxu0 0
    %219 = vmatpush2.bf16.msra.mxu0 0
    %220 = vmatprep.subr.bf16.mxu0 0
    %221 = vmatpush2.bf16.msra.mxu0 0
    %222 = vmatprep.subr.bf16.mxu0 0
    %223 = vmatpush2.bf16.msra.mxu0 0
    %224 = vmatprep.subr.bf16.mxu0 0
    %225 = vmatpush2.bf16.msra.mxu0 0
    %226 = vmatprep.mubr.bf16.mxu0 0
    %227 = vmatmul.mubr.bf16.gmra.mxu0 %v122
    %v228 = vpop.f32.mrf.mxu0
    %v229 = vadd.f32 %v144, %v228
    %v230 = vpop.f32.mrf.mxu0
    %v231 = vpop.f32.mrf.mxu0
    %v232 = vpop.f32.mrf.mxu0
    %233 = vdwg.mxu0
    %234 = vst [vmem:[#allocation8] sm:$0x3] %v229
    // Predicated region
    $region34: #{tpu_custom_call.1} parent=1 // pred_check
      _
    $region35: #{tpu_custom_call.1} parent=1 // pred_check_branch
      %236 = sbr.rel (0) target = $region37
    $region36: #{tpu_custom_call.1} parent=1 // pred_region
      %s238 = ssub.s32 32, 32
      %239 = vsyncadd [#allocation4], %s238
      %s241 = sshll.u32 [#allocation8], 4
      %s242 = int_to_ptr.vmem [resolvable:$true] %s241
      %244 = dma.vmem_to_hbm [thread:$0]  %s242, 32, %s5, [#allocation4]
    $region37: #{tpu_custom_call.1} parent=1 // pred_fallthru
      _
    // Predicated region
    $region38: #{tpu_custom_call.1} parent=1 // pred_check
      _
    $region39: #{tpu_custom_call.1} parent=1 // pred_check_branch
      %246 = sbr.rel (0) target = $region41
    $region40: #{tpu_custom_call.1} parent=1 // pred_region
      %247 = dma.done [#allocation4], 32
    $region41: #{tpu_custom_call.1} parent=1 // pred_fallthru
      _
    %248 = vsyncpa [#allocation3], 1
    %249 = vsyncpa [#allocation6], 1
    %250 = vsyncpa [#allocation4], 1

</llo_original>
